<compile_context>
chip_gen: v7x
topology: tpu7x:2x2x1
jax: 0.10.0
libtpu: 0.0.40
codegen_flags: <defaults>
</compile_context>

<pallas_src>
import functools

import jax
import jax.numpy as jnp
from jax import lax
from jax.experimental import pallas as pl
from jax.experimental.pallas import tpu as pltpu

EPS = 1e-3  # the PyTorch module explicitly sets eps=0.001 on every BatchNorm2d


# ----------------------------------------------------------------------------
# Fused Pallas kernel: one packed image-group per grid step, (G*C, HW) layout
# ----------------------------------------------------------------------------
def _fused_kernel(HW, W, x_ref, m_ref, w1_ref, b1_ref, w2_ref, b2_ref,
                  we1_ref, be1_ref, wA_ref, wB_ref, bt_ref, o_ref):
    x = x_ref[0]                                   # (GC, HW) f32, HW on lanes

    # 3x3 tap offsets on the flattened per-row spatial axis (rows = (image,
    # channel) pairs, so a lane roll never crosses image boundaries; the
    # prefetched masks zero the pad=1 border positions).
    offs = [dy * W + dx for dy in (-1, 0, 1) for dx in (-1, 0, 1)]

    def shifted(a, k):
        """out[:, p] = a[:, p + off_k], zeroed outside the image (pad=1)."""
        off = offs[k]
        r = a if off == 0 else pltpu.roll(a, shift=(-off) % HW, axis=1)
        return r if k == 4 else r * m_ref[k]       # center tap needs no mask

    # ---- conv1: dense 3x3 + folded BN + ReLU — ONE stacked MXU matmul ------
    S = jnp.concatenate([shifted(x, k) for k in range(9)], axis=0)
    y1 = jnp.dot(w1_ref[...], S.astype(jnp.bfloat16),
                 preferred_element_type=jnp.float32) + b1_ref[...]
    y1 = jnp.maximum(y1, 0.0)

    # ---- conv2: depthwise 3x3 + folded BN + ReLU (VPU, f32) ----------------
    acc = w2_ref[0] * shifted(y1, 0) + b2_ref[...]          # bias as init
    for k in range(1, 9):
        acc = acc + w2_ref[k] * shifted(y1, k)               # (GC,1)*(GC,HW)
    y2 = jnp.maximum(acc, 0.0)

    # ---- edge_conv1: depthwise 3x3 + folded BN + ReLU (VPU, f32) -----------
    acc = we1_ref[0] * shifted(y2, 0) + be1_ref[...]
    for k in range(1, 9):
        acc = acc + we1_ref[k] * shifted(y2, k)
    e1 = jnp.maximum(acc, 0.0)

    # ---- fused tail: edge_conv2+BN, *0.1, conv3+BN, +residual, ReLU --------
    y3 = (jnp.dot(wA_ref[...], y2.astype(jnp.bfloat16),
                  preferred_element_type=jnp.float32)
          + jnp.dot(wB_ref[...], e1.astype(jnp.bfloat16),
                    preferred_element_type=jnp.float32)
          + bt_ref[...] + x)
    o_ref[0] = jnp.maximum(y3, 0.0).astype(o_ref.dtype)


# ----------------------------------------------------------------------------
# Host-side prep: masks, BN folding, block-diagonal packed weights
# ----------------------------------------------------------------------------
def _make_masks(H, W):
    """f32 0/1 masks, shape (9, 1, H*W): valid positions for each 3x3 tap."""
    HW = H * W
    pos = jnp.arange(HW, dtype=jnp.int32)
    hh = pos // W
    ww = pos - hh * W
    masks = []
    for dy in (-1, 0, 1):
        for dx in (-1, 0, 1):
            m = jnp.ones((HW,), jnp.float32)
            if dy == -1:
                m = m * (hh >= 1).astype(jnp.float32)
            elif dy == 1:
                m = m * (hh <= H - 2).astype(jnp.float32)
            if dx == -1:
                m = m * (ww >= 1).astype(jnp.float32)
            elif dx == 1:
                m = m * (ww <= W - 2).astype(jnp.float32)
            masks.append(m)
    return jnp.stack(masks).reshape(9, 1, HW)


def _fold_bn(bn):
    gamma, beta, mean, var = bn
    s = gamma / jnp.sqrt(var + EPS)
    return s, beta - mean * s


def _prep_dense3x3_stacked(w, bn, G):
    """(Cout,Cin,3,3) torch weight + BN -> stacked block-diag (G*C, 9*G*C)."""
    s, b = _fold_bn(bn)
    C = w.shape[0]
    wk = jnp.transpose(w, (2, 3, 0, 1)).reshape(9, C, C)     # (k, out, in)
    wk = wk * s[None, :, None]
    eye = jnp.eye(G, dtype=wk.dtype)
    w_stk = jnp.einsum("koi,gh->gokhi", wk, eye).reshape(G * C, 9 * G * C)
    b_t = jnp.tile(b, G).reshape(G * C, 1)
    return w_stk.astype(jnp.bfloat16), b_t


def _prep_dw3x3(w, bn, G):
    """(C,1,3,3) torch depthwise weight + BN -> (9, G*C, 1) taps, (G*C,1) bias."""
    s, b = _fold_bn(bn)
    C = w.shape[0]
    wk = jnp.transpose(w[:, 0], (1, 2, 0)).reshape(9, C) * s[None, :]
    wk = jnp.tile(wk, (1, G)).reshape(9, G * C, 1)
    b_t = jnp.tile(b, G).reshape(G * C, 1)
    return wk, b_t


def _prep_tail(w_e2, ebn2, w3, bn3, G):
    """Fold edge_conv2+BN, conv3+BN and the 0.1 scale into two block-diag mats."""
    s2, b2 = _fold_bn(ebn2)
    s3, b3 = _fold_bn(bn3)
    C = w3.shape[0]
    E = s2[:, None] * w_e2[:, :, 0, 0]            # folded edge_conv2 (C, C)
    M3 = s3[:, None] * w3[:, :, 0, 0]             # folded conv3      (C, C)
    eye = jnp.eye(G, dtype=M3.dtype)
    wA = jnp.kron(eye, M3).astype(jnp.bfloat16)            # acts on y2
    wB = jnp.kron(eye, 0.1 * (M3 @ E)).astype(jnp.bfloat16)  # acts on e1
    bt = jnp.tile(0.1 * (M3 @ b2) + b3, G).reshape(G * C, 1)
    return wA, wB, bt


# ----------------------------------------------------------------------------
# Parameter setup (deterministic)
# ----------------------------------------------------------------------------
def init_params(C, key):
    ks = jax.random.split(key, 10)

    def bn_params(k):
        k1, k2, k3, k4 = jax.random.split(k, 4)
        gamma = 1.0 + 0.1 * jax.random.normal(k1, (C,), jnp.float32)
        beta = 0.1 * jax.random.normal(k2, (C,), jnp.float32)
        mean = 0.1 * jax.random.normal(k3, (C,), jnp.float32)
        var = jax.random.uniform(k4, (C,), jnp.float32, 0.5, 1.5)
        return (gamma, beta, mean, var)

    return {
        "conv1_w": 0.2 * jax.random.normal(ks[0], (C, C, 3, 3), jnp.float32),
        "bn1": bn_params(ks[1]),
        "conv2_w": 0.2 * jax.random.normal(ks[2], (C, 1, 3, 3), jnp.float32),
        "bn2": bn_params(ks[3]),
        "edge1_w": 0.2 * jax.random.normal(ks[4], (C, 1, 3, 3), jnp.float32),
        "ebn1": bn_params(ks[5]),
        "edge2_w": 0.2 * jax.random.normal(ks[6], (C, C, 1, 1), jnp.float32),
        "ebn2": bn_params(ks[7]),
        "conv3_w": 0.2 * jax.random.normal(ks[8], (C, C, 1, 1), jnp.float32),
        "bn3": bn_params(ks[9]),
    }


# ----------------------------------------------------------------------------
# Forward wrapper (NCHW in / NCHW out; pure reshape to packed (G*C, H*W))
# ----------------------------------------------------------------------------
def edge_aware_forward(x_nchw, params, images_per_block=None):
    N, C, H, W = x_nchw.shape
    HW = H * W

    if images_per_block is None:
        G = min(N, max(1, 8 // C))      # pack images until f32 sublanes full
        while N % G:
            G -= 1
    else:
        G = images_per_block
    NG = N // G
    GC = G * C

    x = x_nchw.reshape(NG, GC, HW).astype(jnp.float32)
    masks = _make_masks(H, W)
    w1, b1 = _prep_dense3x3_stacked(params["conv1_w"], params["bn1"], G)
    w2, b2 = _prep_dw3x3(params["conv2_w"], params["bn2"], G)
    we1, be1 = _prep_dw3x3(params["edge1_w"], params["ebn1"], G)
    wA, wB, bt = _prep_tail(params["edge2_w"], params["ebn2"],
                            params["conv3_w"], params["bn3"], G)

    out = pl.pallas_call(
        functools.partial(_fused_kernel, HW, W),
        out_shape=jax.ShapeDtypeStruct((NG, GC, HW), jnp.float32),
        grid=(NG,),
        in_specs=[
            pl.BlockSpec((1, GC, HW), lambda n: (n, 0, 0)),    # x (packed group)
            pl.BlockSpec((9, 1, HW), lambda n: (0, 0, 0)),     # border masks
            pl.BlockSpec((GC, 9 * GC), lambda n: (0, 0)),      # stacked conv1 W
            pl.BlockSpec((GC, 1), lambda n: (0, 0)),           # conv1 bias
            pl.BlockSpec((9, GC, 1), lambda n: (0, 0, 0)),     # conv2 dw taps
            pl.BlockSpec((GC, 1), lambda n: (0, 0)),           # conv2 bias
            pl.BlockSpec((9, GC, 1), lambda n: (0, 0, 0)),     # edge1 dw taps
            pl.BlockSpec((GC, 1), lambda n: (0, 0)),           # edge1 bias
            pl.BlockSpec((GC, GC), lambda n: (0, 0)),          # tail A (y2 path)
            pl.BlockSpec((GC, GC), lambda n: (0, 0)),          # tail B (e1 path)
            pl.BlockSpec((GC, 1), lambda n: (0, 0)),           # tail fused bias
        ],
        out_specs=pl.BlockSpec((1, GC, HW), lambda n: (n, 0, 0)),
        compiler_params=pltpu.CompilerParams(
            dimension_semantics=("parallel",)),
    )(x, masks, w1, b1, w2, b2, we1, be1, wA, wB, bt)
    return out.reshape(N, C, H, W)


# ----------------------------------------------------------------------------
# Pure-JAX f32 reference (eval-mode BN), for correctness check
# ----------------------------------------------------------------------------
def reference_forward(x_nchw, params):
    x = jnp.transpose(x_nchw, (0, 2, 3, 1)).astype(jnp.float32)
    C = x.shape[-1]

    def bn(y, p):
        g, b, m, v = p
        return (y - m) / jnp.sqrt(v + EPS) * g + b

    def conv3x3(y, w):
        k = jnp.transpose(w, (2, 3, 1, 0))
        return lax.conv_general_dilated(
            y, k, (1, 1), ((1, 1), (1, 1)),
            dimension_numbers=("NHWC", "HWIO", "NHWC"),
            precision=lax.Precision.HIGHEST)

    def dw3x3(y, w):
        k = jnp.transpose(w, (2, 3, 1, 0))
        return lax.conv_general_dilated(
            y, k, (1, 1), ((1, 1), (1, 1)),
            dimension_numbers=("NHWC", "HWIO", "NHWC"),
            feature_group_count=C, precision=lax.Precision.HIGHEST)

    def c1x1(y, w):
        return jnp.einsum("nhwc,dc->nhwd", y, w[:, :, 0, 0],
                          precision=lax.Precision.HIGHEST)

    residual = x
    h = jax.nn.relu(bn(conv3x3(x, params["conv1_w"]), params["bn1"]))
    h = jax.nn.relu(bn(dw3x3(h, params["conv2_w"]), params["bn2"]))
    e = jax.nn.relu(bn(dw3x3(h, params["edge1_w"]), params["ebn1"]))
    e = bn(c1x1(e, params["edge2_w"]), params["ebn2"])
    h = h + e * 0.1
    h = bn(c1x1(h, params["conv3_w"]), params["bn3"])
    h = jax.nn.relu(h + residual)
    return jnp.transpose(h, (0, 3, 1, 2))


# ----------------------------------------------------------------------------
if __name__ == "__main__":
    N, C, H, W = 2, 4, 16, 16
    x = jax.random.normal(jax.random.PRNGKey(0), (N, C, H, W), jnp.float32)
    params = init_params(C, jax.random.PRNGKey(1))

    out = jax.block_until_ready(edge_aware_forward(x, params))
    ref = reference_forward(x, params)

    assert out.shape == (N, C, H, W)
    # The MXU matmuls run with bf16 operands (same rounding as default MXU
    # precision, f32 accumulation) while the reference is full f32 with
    # Precision.HIGHEST, so use a bf16-level tolerance.
    max_err = float(jnp.max(jnp.abs(out - ref)))
    assert jnp.allclose(out, ref, rtol=3e-2, atol=3e-2), (
        f"mismatch vs reference: max |err| = {max_err}")
    print("KERNEL_OK")
</pallas_src>

<mosaic_0001>
module attributes {stable_mosaic.version = 11 : i64} {
  func.func @_fused_kernel(%arg0: i32, %arg1: memref<1x8x256xf32, #tpu.memory_space<vmem>>, %arg2: memref<9x1x256xf32, #tpu.memory_space<vmem>>, %arg3: memref<8x72xbf16, #tpu.memory_space<vmem>>, %arg4: memref<8x1xf32, #tpu.memory_space<vmem>>, %arg5: memref<9x8x1xf32, #tpu.memory_space<vmem>>, %arg6: memref<8x1xf32, #tpu.memory_space<vmem>>, %arg7: memref<9x8x1xf32, #tpu.memory_space<vmem>>, %arg8: memref<8x1xf32, #tpu.memory_space<vmem>>, %arg9: memref<8x8xbf16, #tpu.memory_space<vmem>>, %arg10: memref<8x8xbf16, #tpu.memory_space<vmem>>, %arg11: memref<8x1xf32, #tpu.memory_space<vmem>>, %arg12: memref<1x8x256xf32, #tpu.memory_space<vmem>>) attributes {dimension_semantics = [#tpu.dimension_semantics<parallel>], iteration_bounds = array<i64: 1>, scalar_prefetch = 0 : i64, scratch_operands = 0 : i64, tpu.core_type = #tpu.core_type<tc>, window_params = [{transform_indices = @transform_0, window_bounds = array<i64: 1, 8, 256>}, {pipeline_mode = #tpu.pipeline_mode<synchronous>, transform_indices = @transform_1, window_bounds = array<i64: 9, 1, 256>}, {pipeline_mode = #tpu.pipeline_mode<synchronous>, transform_indices = @transform_2, window_bounds = array<i64: 8, 72>}, {pipeline_mode = #tpu.pipeline_mode<synchronous>, transform_indices = @transform_3, window_bounds = array<i64: 8, 1>}, {pipeline_mode = #tpu.pipeline_mode<synchronous>, transform_indices = @transform_4, window_bounds = array<i64: 9, 8, 1>}, {pipeline_mode = #tpu.pipeline_mode<synchronous>, transform_indices = @transform_5, window_bounds = array<i64: 8, 1>}, {pipeline_mode = #tpu.pipeline_mode<synchronous>, transform_indices = @transform_6, window_bounds = array<i64: 9, 8, 1>}, {pipeline_mode = #tpu.pipeline_mode<synchronous>, transform_indices = @transform_7, window_bounds = array<i64: 8, 1>}, {pipeline_mode = #tpu.pipeline_mode<synchronous>, transform_indices = @transform_8, window_bounds = array<i64: 8, 8>}, {pipeline_mode = #tpu.pipeline_mode<synchronous>, transform_indices = @transform_9, window_bounds = array<i64: 8, 8>}, {pipeline_mode = #tpu.pipeline_mode<synchronous>, transform_indices = @transform_10, window_bounds = array<i64: 8, 1>}, {transform_indices = @transform_11, window_bounds = array<i64: 1, 8, 256>}]} {
    %c0 = arith.constant 0 : index
    %c0_0 = arith.constant 0 : index
    %c0_1 = arith.constant 0 : index
    %0 = vector.load %arg1[%c0, %c0_0, %c0_1] : memref<1x8x256xf32, #tpu.memory_space<vmem>>, vector<1x8x256xf32>
    %1 = vector.shape_cast %0 : vector<1x8x256xf32> to vector<8x256xf32>
    %c17_i32 = arith.constant 17 : i32
    %2 = tpu.dynamic_rotate %1 by %c17_i32 dim 1 : vector<8x256xf32>, i32 -> vector<8x256xf32>
    %c0_2 = arith.constant 0 : index
    %c0_3 = arith.constant 0 : index
    %c0_4 = arith.constant 0 : index
    %3 = vector.load %arg2[%c0_2, %c0_3, %c0_4] : memref<9x1x256xf32, #tpu.memory_space<vmem>>, vector<1x1x256xf32>
    %4 = vector.shape_cast %3 : vector<1x1x256xf32> to vector<1x256xf32>
    %5 = vector.broadcast %4 : vector<1x256xf32> to vector<8x256xf32>
    %6 = arith.mulf %2, %5 : vector<8x256xf32>
    %c16_i32 = arith.constant 16 : i32
    %7 = tpu.dynamic_rotate %1 by %c16_i32 dim 1 : vector<8x256xf32>, i32 -> vector<8x256xf32>
    %c1 = arith.constant 1 : index
    %c0_5 = arith.constant 0 : index
    %c0_6 = arith.constant 0 : index
    %8 = vector.load %arg2[%c1, %c0_5, %c0_6] : memref<9x1x256xf32, #tpu.memory_space<vmem>>, vector<1x1x256xf32>
    %9 = vector.shape_cast %8 : vector<1x1x256xf32> to vector<1x256xf32>
    %10 = vector.broadcast %9 : vector<1x256xf32> to vector<8x256xf32>
    %11 = arith.mulf %7, %10 : vector<8x256xf32>
    %c15_i32 = arith.constant 15 : i32
    %12 = tpu.dynamic_rotate %1 by %c15_i32 dim 1 : vector<8x256xf32>, i32 -> vector<8x256xf32>
    %c2 = arith.constant 2 : index
    %c0_7 = arith.constant 0 : index
    %c0_8 = arith.constant 0 : index
    %13 = vector.load %arg2[%c2, %c0_7, %c0_8] : memref<9x1x256xf32, #tpu.memory_space<vmem>>, vector<1x1x256xf32>
    %14 = vector.shape_cast %13 : vector<1x1x256xf32> to vector<1x256xf32>
    %15 = vector.broadcast %14 : vector<1x256xf32> to vector<8x256xf32>
    %16 = arith.mulf %12, %15 : vector<8x256xf32>
    %c1_i32 = arith.constant 1 : i32
    %17 = tpu.dynamic_rotate %1 by %c1_i32 dim 1 : vector<8x256xf32>, i32 -> vector<8x256xf32>
    %c3 = arith.constant 3 : index
    %c0_9 = arith.constant 0 : index
    %c0_10 = arith.constant 0 : index
    %18 = vector.load %arg2[%c3, %c0_9, %c0_10] : memref<9x1x256xf32, #tpu.memory_space<vmem>>, vector<1x1x256xf32>
    %19 = vector.shape_cast %18 : vector<1x1x256xf32> to vector<1x256xf32>
    %20 = vector.broadcast %19 : vector<1x256xf32> to vector<8x256xf32>
    %21 = arith.mulf %17, %20 : vector<8x256xf32>
    %c255_i32 = arith.constant 255 : i32
    %22 = tpu.dynamic_rotate %1 by %c255_i32 dim 1 : vector<8x256xf32>, i32 -> vector<8x256xf32>
    %c5 = arith.constant 5 : index
    %c0_11 = arith.constant 0 : index
    %c0_12 = arith.constant 0 : index
    %23 = vector.load %arg2[%c5, %c0_11, %c0_12] : memref<9x1x256xf32, #tpu.memory_space<vmem>>, vector<1x1x256xf32>
    %24 = vector.shape_cast %23 : vector<1x1x256xf32> to vector<1x256xf32>
    %25 = vector.broadcast %24 : vector<1x256xf32> to vector<8x256xf32>
    %26 = arith.mulf %22, %25 : vector<8x256xf32>
    %c241_i32 = arith.constant 241 : i32
    %27 = tpu.dynamic_rotate %1 by %c241_i32 dim 1 : vector<8x256xf32>, i32 -> vector<8x256xf32>
    %c6 = arith.constant 6 : index
    %c0_13 = arith.constant 0 : index
    %c0_14 = arith.constant 0 : index
    %28 = vector.load %arg2[%c6, %c0_13, %c0_14] : memref<9x1x256xf32, #tpu.memory_space<vmem>>, vector<1x1x256xf32>
    %29 = vector.shape_cast %28 : vector<1x1x256xf32> to vector<1x256xf32>
    %30 = vector.broadcast %29 : vector<1x256xf32> to vector<8x256xf32>
    %31 = arith.mulf %27, %30 : vector<8x256xf32>
    %c240_i32 = arith.constant 240 : i32
    %32 = tpu.dynamic_rotate %1 by %c240_i32 dim 1 : vector<8x256xf32>, i32 -> vector<8x256xf32>
    %c7 = arith.constant 7 : index
    %c0_15 = arith.constant 0 : index
    %c0_16 = arith.constant 0 : index
    %33 = vector.load %arg2[%c7, %c0_15, %c0_16] : memref<9x1x256xf32, #tpu.memory_space<vmem>>, vector<1x1x256xf32>
    %34 = vector.shape_cast %33 : vector<1x1x256xf32> to vector<1x256xf32>
    %35 = vector.broadcast %34 : vector<1x256xf32> to vector<8x256xf32>
    %36 = arith.mulf %32, %35 : vector<8x256xf32>
    %c239_i32 = arith.constant 239 : i32
    %37 = tpu.dynamic_rotate %1 by %c239_i32 dim 1 : vector<8x256xf32>, i32 -> vector<8x256xf32>
    %c8 = arith.constant 8 : index
    %c0_17 = arith.constant 0 : index
    %c0_18 = arith.constant 0 : index
    %38 = vector.load %arg2[%c8, %c0_17, %c0_18] : memref<9x1x256xf32, #tpu.memory_space<vmem>>, vector<1x1x256xf32>
    %39 = vector.shape_cast %38 : vector<1x1x256xf32> to vector<1x256xf32>
    %40 = vector.broadcast %39 : vector<1x256xf32> to vector<8x256xf32>
    %41 = arith.mulf %37, %40 : vector<8x256xf32>
    %42 = tpu.concatenate %6, %11, %16, %21, %1, %26, %31, %36, %41 in 0 : vector<8x256xf32>, vector<8x256xf32>, vector<8x256xf32>, vector<8x256xf32>, vector<8x256xf32>, vector<8x256xf32>, vector<8x256xf32>, vector<8x256xf32>, vector<8x256xf32> -> vector<72x256xf32>
    %c0_19 = arith.constant 0 : index
    %c0_20 = arith.constant 0 : index
    %43 = vector.load %arg3[%c0_19, %c0_20] : memref<8x72xbf16, #tpu.memory_space<vmem>>, vector<8x72xbf16>
    %44 = arith.truncf %42 : vector<72x256xf32> to vector<72x256xbf16>
    %cst = arith.constant dense<0.000000e+00> : vector<8x256xf32>
    %45 = tpu.matmul %43, %44, %cst {dimension_numbers = #tpu.dot_dimension_numbers<[1], [0], [0], [1], [0, 0, 1, 1], [], []>} : vector<8x72xbf16>, vector<72x256xbf16>, vector<8x256xf32> -> vector<8x256xf32>
    %c0_21 = arith.constant 0 : index
    %c0_22 = arith.constant 0 : index
    %46 = vector.load %arg4[%c0_21, %c0_22] : memref<8x1xf32, #tpu.memory_space<vmem>>, vector<8x1xf32>
    %47 = vector.broadcast %46 : vector<8x1xf32> to vector<8x256xf32>
    %48 = arith.addf %45, %47 : vector<8x256xf32>
    %cst_23 = arith.constant 0.000000e+00 : f32
    %49 = vector.broadcast %cst_23 : f32 to vector<8x256xf32>
    %50 = arith.maximumf %48, %49 : vector<8x256xf32>
    %c0_24 = arith.constant 0 : index
    %c0_25 = arith.constant 0 : index
    %c0_26 = arith.constant 0 : index
    %51 = vector.load %arg5[%c0_24, %c0_25, %c0_26] : memref<9x8x1xf32, #tpu.memory_space<vmem>>, vector<1x8x1xf32>
    %52 = vector.shape_cast %51 : vector<1x8x1xf32> to vector<8x1xf32>
    %c17_i32_27 = arith.constant 17 : i32
    %53 = tpu.dynamic_rotate %50 by %c17_i32_27 dim 1 : vector<8x256xf32>, i32 -> vector<8x256xf32>
    %c0_28 = arith.constant 0 : index
    %c0_29 = arith.constant 0 : index
    %c0_30 = arith.constant 0 : index
    %54 = vector.load %arg2[%c0_28, %c0_29, %c0_30] : memref<9x1x256xf32, #tpu.memory_space<vmem>>, vector<1x1x256xf32>
    %55 = vector.shape_cast %54 : vector<1x1x256xf32> to vector<1x256xf32>
    %56 = vector.broadcast %55 : vector<1x256xf32> to vector<8x256xf32>
    %57 = arith.mulf %53, %56 : vector<8x256xf32>
    %58 = vector.broadcast %52 : vector<8x1xf32> to vector<8x256xf32>
    %59 = arith.mulf %58, %57 : vector<8x256xf32>
    %c0_31 = arith.constant 0 : index
    %c0_32 = arith.constant 0 : index
    %60 = vector.load %arg6[%c0_31, %c0_32] : memref<8x1xf32, #tpu.memory_space<vmem>>, vector<8x1xf32>
    %61 = vector.broadcast %60 : vector<8x1xf32> to vector<8x256xf32>
    %62 = arith.addf %59, %61 : vector<8x256xf32>
    %c1_33 = arith.constant 1 : index
    %c0_34 = arith.constant 0 : index
    %c0_35 = arith.constant 0 : index
    %63 = vector.load %arg5[%c1_33, %c0_34, %c0_35] : memref<9x8x1xf32, #tpu.memory_space<vmem>>, vector<1x8x1xf32>
    %64 = vector.shape_cast %63 : vector<1x8x1xf32> to vector<8x1xf32>
    %c16_i32_36 = arith.constant 16 : i32
    %65 = tpu.dynamic_rotate %50 by %c16_i32_36 dim 1 : vector<8x256xf32>, i32 -> vector<8x256xf32>
    %c1_37 = arith.constant 1 : index
    %c0_38 = arith.constant 0 : index
    %c0_39 = arith.constant 0 : index
    %66 = vector.load %arg2[%c1_37, %c0_38, %c0_39] : memref<9x1x256xf32, #tpu.memory_space<vmem>>, vector<1x1x256xf32>
    %67 = vector.shape_cast %66 : vector<1x1x256xf32> to vector<1x256xf32>
    %68 = vector.broadcast %67 : vector<1x256xf32> to vector<8x256xf32>
    %69 = arith.mulf %65, %68 : vector<8x256xf32>
    %70 = vector.broadcast %64 : vector<8x1xf32> to vector<8x256xf32>
    %71 = arith.mulf %70, %69 : vector<8x256xf32>
    %72 = arith.addf %62, %71 : vector<8x256xf32>
    %c2_40 = arith.constant 2 : index
    %c0_41 = arith.constant 0 : index
    %c0_42 = arith.constant 0 : index
    %73 = vector.load %arg5[%c2_40, %c0_41, %c0_42] : memref<9x8x1xf32, #tpu.memory_space<vmem>>, vector<1x8x1xf32>
    %74 = vector.shape_cast %73 : vector<1x8x1xf32> to vector<8x1xf32>
    %c15_i32_43 = arith.constant 15 : i32
    %75 = tpu.dynamic_rotate %50 by %c15_i32_43 dim 1 : vector<8x256xf32>, i32 -> vector<8x256xf32>
    %c2_44 = arith.constant 2 : index
    %c0_45 = arith.constant 0 : index
    %c0_46 = arith.constant 0 : index
    %76 = vector.load %arg2[%c2_44, %c0_45, %c0_46] : memref<9x1x256xf32, #tpu.memory_space<vmem>>, vector<1x1x256xf32>
    %77 = vector.shape_cast %76 : vector<1x1x256xf32> to vector<1x256xf32>
    %78 = vector.broadcast %77 : vector<1x256xf32> to vector<8x256xf32>
    %79 = arith.mulf %75, %78 : vector<8x256xf32>
    %80 = vector.broadcast %74 : vector<8x1xf32> to vector<8x256xf32>
    %81 = arith.mulf %80, %79 : vector<8x256xf32>
    %82 = arith.addf %72, %81 : vector<8x256xf32>
    %c3_47 = arith.constant 3 : index
    %c0_48 = arith.constant 0 : index
    %c0_49 = arith.constant 0 : index
    %83 = vector.load %arg5[%c3_47, %c0_48, %c0_49] : memref<9x8x1xf32, #tpu.memory_space<vmem>>, vector<1x8x1xf32>
    %84 = vector.shape_cast %83 : vector<1x8x1xf32> to vector<8x1xf32>
    %c1_i32_50 = arith.constant 1 : i32
    %85 = tpu.dynamic_rotate %50 by %c1_i32_50 dim 1 : vector<8x256xf32>, i32 -> vector<8x256xf32>
    %c3_51 = arith.constant 3 : index
    %c0_52 = arith.constant 0 : index
    %c0_53 = arith.constant 0 : index
    %86 = vector.load %arg2[%c3_51, %c0_52, %c0_53] : memref<9x1x256xf32, #tpu.memory_space<vmem>>, vector<1x1x256xf32>
    %87 = vector.shape_cast %86 : vector<1x1x256xf32> to vector<1x256xf32>
    %88 = vector.broadcast %87 : vector<1x256xf32> to vector<8x256xf32>
    %89 = arith.mulf %85, %88 : vector<8x256xf32>
    %90 = vector.broadcast %84 : vector<8x1xf32> to vector<8x256xf32>
    %91 = arith.mulf %90, %89 : vector<8x256xf32>
    %92 = arith.addf %82, %91 : vector<8x256xf32>
    %c4 = arith.constant 4 : index
    %c0_54 = arith.constant 0 : index
    %c0_55 = arith.constant 0 : index
    %93 = vector.load %arg5[%c4, %c0_54, %c0_55] : memref<9x8x1xf32, #tpu.memory_space<vmem>>, vector<1x8x1xf32>
    %94 = vector.shape_cast %93 : vector<1x8x1xf32> to vector<8x1xf32>
    %95 = vector.broadcast %94 : vector<8x1xf32> to vector<8x256xf32>
    %96 = arith.mulf %95, %50 : vector<8x256xf32>
    %97 = arith.addf %92, %96 : vector<8x256xf32>
    %c5_56 = arith.constant 5 : index
    %c0_57 = arith.constant 0 : index
    %c0_58 = arith.constant 0 : index
    %98 = vector.load %arg5[%c5_56, %c0_57, %c0_58] : memref<9x8x1xf32, #tpu.memory_space<vmem>>, vector<1x8x1xf32>
    %99 = vector.shape_cast %98 : vector<1x8x1xf32> to vector<8x1xf32>
    %c255_i32_59 = arith.constant 255 : i32
    %100 = tpu.dynamic_rotate %50 by %c255_i32_59 dim 1 : vector<8x256xf32>, i32 -> vector<8x256xf32>
    %c5_60 = arith.constant 5 : index
    %c0_61 = arith.constant 0 : index
    %c0_62 = arith.constant 0 : index
    %101 = vector.load %arg2[%c5_60, %c0_61, %c0_62] : memref<9x1x256xf32, #tpu.memory_space<vmem>>, vector<1x1x256xf32>
    %102 = vector.shape_cast %101 : vector<1x1x256xf32> to vector<1x256xf32>
    %103 = vector.broadcast %102 : vector<1x256xf32> to vector<8x256xf32>
    %104 = arith.mulf %100, %103 : vector<8x256xf32>
    %105 = vector.broadcast %99 : vector<8x1xf32> to vector<8x256xf32>
    %106 = arith.mulf %105, %104 : vector<8x256xf32>
    %107 = arith.addf %97, %106 : vector<8x256xf32>
    %c6_63 = arith.constant 6 : index
    %c0_64 = arith.constant 0 : index
    %c0_65 = arith.constant 0 : index
    %108 = vector.load %arg5[%c6_63, %c0_64, %c0_65] : memref<9x8x1xf32, #tpu.memory_space<vmem>>, vector<1x8x1xf32>
    %109 = vector.shape_cast %108 : vector<1x8x1xf32> to vector<8x1xf32>
    %c241_i32_66 = arith.constant 241 : i32
    %110 = tpu.dynamic_rotate %50 by %c241_i32_66 dim 1 : vector<8x256xf32>, i32 -> vector<8x256xf32>
    %c6_67 = arith.constant 6 : index
    %c0_68 = arith.constant 0 : index
    %c0_69 = arith.constant 0 : index
    %111 = vector.load %arg2[%c6_67, %c0_68, %c0_69] : memref<9x1x256xf32, #tpu.memory_space<vmem>>, vector<1x1x256xf32>
    %112 = vector.shape_cast %111 : vector<1x1x256xf32> to vector<1x256xf32>
    %113 = vector.broadcast %112 : vector<1x256xf32> to vector<8x256xf32>
    %114 = arith.mulf %110, %113 : vector<8x256xf32>
    %115 = vector.broadcast %109 : vector<8x1xf32> to vector<8x256xf32>
    %116 = arith.mulf %115, %114 : vector<8x256xf32>
    %117 = arith.addf %107, %116 : vector<8x256xf32>
    %c7_70 = arith.constant 7 : index
    %c0_71 = arith.constant 0 : index
    %c0_72 = arith.constant 0 : index
    %118 = vector.load %arg5[%c7_70, %c0_71, %c0_72] : memref<9x8x1xf32, #tpu.memory_space<vmem>>, vector<1x8x1xf32>
    %119 = vector.shape_cast %118 : vector<1x8x1xf32> to vector<8x1xf32>
    %c240_i32_73 = arith.constant 240 : i32
    %120 = tpu.dynamic_rotate %50 by %c240_i32_73 dim 1 : vector<8x256xf32>, i32 -> vector<8x256xf32>
    %c7_74 = arith.constant 7 : index
    %c0_75 = arith.constant 0 : index
    %c0_76 = arith.constant 0 : index
    %121 = vector.load %arg2[%c7_74, %c0_75, %c0_76] : memref<9x1x256xf32, #tpu.memory_space<vmem>>, vector<1x1x256xf32>
    %122 = vector.shape_cast %121 : vector<1x1x256xf32> to vector<1x256xf32>
    %123 = vector.broadcast %122 : vector<1x256xf32> to vector<8x256xf32>
    %124 = arith.mulf %120, %123 : vector<8x256xf32>
    %125 = vector.broadcast %119 : vector<8x1xf32> to vector<8x256xf32>
    %126 = arith.mulf %125, %124 : vector<8x256xf32>
    %127 = arith.addf %117, %126 : vector<8x256xf32>
    %c8_77 = arith.constant 8 : index
    %c0_78 = arith.constant 0 : index
    %c0_79 = arith.constant 0 : index
    %128 = vector.load %arg5[%c8_77, %c0_78, %c0_79] : memref<9x8x1xf32, #tpu.memory_space<vmem>>, vector<1x8x1xf32>
    %129 = vector.shape_cast %128 : vector<1x8x1xf32> to vector<8x1xf32>
    %c239_i32_80 = arith.constant 239 : i32
    %130 = tpu.dynamic_rotate %50 by %c239_i32_80 dim 1 : vector<8x256xf32>, i32 -> vector<8x256xf32>
    %c8_81 = arith.constant 8 : index
    %c0_82 = arith.constant 0 : index
    %c0_83 = arith.constant 0 : index
    %131 = vector.load %arg2[%c8_81, %c0_82, %c0_83] : memref<9x1x256xf32, #tpu.memory_space<vmem>>, vector<1x1x256xf32>
    %132 = vector.shape_cast %131 : vector<1x1x256xf32> to vector<1x256xf32>
    %133 = vector.broadcast %132 : vector<1x256xf32> to vector<8x256xf32>
    %134 = arith.mulf %130, %133 : vector<8x256xf32>
    %135 = vector.broadcast %129 : vector<8x1xf32> to vector<8x256xf32>
    %136 = arith.mulf %135, %134 : vector<8x256xf32>
    %137 = arith.addf %127, %136 : vector<8x256xf32>
    %cst_84 = arith.constant 0.000000e+00 : f32
    %138 = vector.broadcast %cst_84 : f32 to vector<8x256xf32>
    %139 = arith.maximumf %137, %138 : vector<8x256xf32>
    %c0_85 = arith.constant 0 : index
    %c0_86 = arith.constant 0 : index
    %c0_87 = arith.constant 0 : index
    %140 = vector.load %arg7[%c0_85, %c0_86, %c0_87] : memref<9x8x1xf32, #tpu.memory_space<vmem>>, vector<1x8x1xf32>
    %141 = vector.shape_cast %140 : vector<1x8x1xf32> to vector<8x1xf32>
    %c17_i32_88 = arith.constant 17 : i32
    %142 = tpu.dynamic_rotate %139 by %c17_i32_88 dim 1 : vector<8x256xf32>, i32 -> vector<8x256xf32>
    %c0_89 = arith.constant 0 : index
    %c0_90 = arith.constant 0 : index
    %c0_91 = arith.constant 0 : index
    %143 = vector.load %arg2[%c0_89, %c0_90, %c0_91] : memref<9x1x256xf32, #tpu.memory_space<vmem>>, vector<1x1x256xf32>
    %144 = vector.shape_cast %143 : vector<1x1x256xf32> to vector<1x256xf32>
    %145 = vector.broadcast %144 : vector<1x256xf32> to vector<8x256xf32>
    %146 = arith.mulf %142, %145 : vector<8x256xf32>
    %147 = vector.broadcast %141 : vector<8x1xf32> to vector<8x256xf32>
    %148 = arith.mulf %147, %146 : vector<8x256xf32>
    %c0_92 = arith.constant 0 : index
    %c0_93 = arith.constant 0 : index
    %149 = vector.load %arg8[%c0_92, %c0_93] : memref<8x1xf32, #tpu.memory_space<vmem>>, vector<8x1xf32>
    %150 = vector.broadcast %149 : vector<8x1xf32> to vector<8x256xf32>
    %151 = arith.addf %148, %150 : vector<8x256xf32>
    %c1_94 = arith.constant 1 : index
    %c0_95 = arith.constant 0 : index
    %c0_96 = arith.constant 0 : index
    %152 = vector.load %arg7[%c1_94, %c0_95, %c0_96] : memref<9x8x1xf32, #tpu.memory_space<vmem>>, vector<1x8x1xf32>
    %153 = vector.shape_cast %152 : vector<1x8x1xf32> to vector<8x1xf32>
    %c16_i32_97 = arith.constant 16 : i32
    %154 = tpu.dynamic_rotate %139 by %c16_i32_97 dim 1 : vector<8x256xf32>, i32 -> vector<8x256xf32>
    %c1_98 = arith.constant 1 : index
    %c0_99 = arith.constant 0 : index
    %c0_100 = arith.constant 0 : index
    %155 = vector.load %arg2[%c1_98, %c0_99, %c0_100] : memref<9x1x256xf32, #tpu.memory_space<vmem>>, vector<1x1x256xf32>
    %156 = vector.shape_cast %155 : vector<1x1x256xf32> to vector<1x256xf32>
    %157 = vector.broadcast %156 : vector<1x256xf32> to vector<8x256xf32>
    %158 = arith.mulf %154, %157 : vector<8x256xf32>
    %159 = vector.broadcast %153 : vector<8x1xf32> to vector<8x256xf32>
    %160 = arith.mulf %159, %158 : vector<8x256xf32>
    %161 = arith.addf %151, %160 : vector<8x256xf32>
    %c2_101 = arith.constant 2 : index
    %c0_102 = arith.constant 0 : index
    %c0_103 = arith.constant 0 : index
    %162 = vector.load %arg7[%c2_101, %c0_102, %c0_103] : memref<9x8x1xf32, #tpu.memory_space<vmem>>, vector<1x8x1xf32>
    %163 = vector.shape_cast %162 : vector<1x8x1xf32> to vector<8x1xf32>
    %c15_i32_104 = arith.constant 15 : i32
    %164 = tpu.dynamic_rotate %139 by %c15_i32_104 dim 1 : vector<8x256xf32>, i32 -> vector<8x256xf32>
    %c2_105 = arith.constant 2 : index
    %c0_106 = arith.constant 0 : index
    %c0_107 = arith.constant 0 : index
    %165 = vector.load %arg2[%c2_105, %c0_106, %c0_107] : memref<9x1x256xf32, #tpu.memory_space<vmem>>, vector<1x1x256xf32>
    %166 = vector.shape_cast %165 : vector<1x1x256xf32> to vector<1x256xf32>
    %167 = vector.broadcast %166 : vector<1x256xf32> to vector<8x256xf32>
    %168 = arith.mulf %164, %167 : vector<8x256xf32>
    %169 = vector.broadcast %163 : vector<8x1xf32> to vector<8x256xf32>
    %170 = arith.mulf %169, %168 : vector<8x256xf32>
    %171 = arith.addf %161, %170 : vector<8x256xf32>
    %c3_108 = arith.constant 3 : index
    %c0_109 = arith.constant 0 : index
    %c0_110 = arith.constant 0 : index
    %172 = vector.load %arg7[%c3_108, %c0_109, %c0_110] : memref<9x8x1xf32, #tpu.memory_space<vmem>>, vector<1x8x1xf32>
    %173 = vector.shape_cast %172 : vector<1x8x1xf32> to vector<8x1xf32>
    %c1_i32_111 = arith.constant 1 : i32
    %174 = tpu.dynamic_rotate %139 by %c1_i32_111 dim 1 : vector<8x256xf32>, i32 -> vector<8x256xf32>
    %c3_112 = arith.constant 3 : index
    %c0_113 = arith.constant 0 : index
    %c0_114 = arith.constant 0 : index
    %175 = vector.load %arg2[%c3_112, %c0_113, %c0_114] : memref<9x1x256xf32, #tpu.memory_space<vmem>>, vector<1x1x256xf32>
    %176 = vector.shape_cast %175 : vector<1x1x256xf32> to vector<1x256xf32>
    %177 = vector.broadcast %176 : vector<1x256xf32> to vector<8x256xf32>
    %178 = arith.mulf %174, %177 : vector<8x256xf32>
    %179 = vector.broadcast %173 : vector<8x1xf32> to vector<8x256xf32>
    %180 = arith.mulf %179, %178 : vector<8x256xf32>
    %181 = arith.addf %171, %180 : vector<8x256xf32>
    %c4_115 = arith.constant 4 : index
    %c0_116 = arith.constant 0 : index
    %c0_117 = arith.constant 0 : index
    %182 = vector.load %arg7[%c4_115, %c0_116, %c0_117] : memref<9x8x1xf32, #tpu.memory_space<vmem>>, vector<1x8x1xf32>
    %183 = vector.shape_cast %182 : vector<1x8x1xf32> to vector<8x1xf32>
    %184 = vector.broadcast %183 : vector<8x1xf32> to vector<8x256xf32>
    %185 = arith.mulf %184, %139 : vector<8x256xf32>
    %186 = arith.addf %181, %185 : vector<8x256xf32>
    %c5_118 = arith.constant 5 : index
    %c0_119 = arith.constant 0 : index
    %c0_120 = arith.constant 0 : index
    %187 = vector.load %arg7[%c5_118, %c0_119, %c0_120] : memref<9x8x1xf32, #tpu.memory_space<vmem>>, vector<1x8x1xf32>
    %188 = vector.shape_cast %187 : vector<1x8x1xf32> to vector<8x1xf32>
    %c255_i32_121 = arith.constant 255 : i32
    %189 = tpu.dynamic_rotate %139 by %c255_i32_121 dim 1 : vector<8x256xf32>, i32 -> vector<8x256xf32>
    %c5_122 = arith.constant 5 : index
    %c0_123 = arith.constant 0 : index
    %c0_124 = arith.constant 0 : index
    %190 = vector.load %arg2[%c5_122, %c0_123, %c0_124] : memref<9x1x256xf32, #tpu.memory_space<vmem>>, vector<1x1x256xf32>
    %191 = vector.shape_cast %190 : vector<1x1x256xf32> to vector<1x256xf32>
    %192 = vector.broadcast %191 : vector<1x256xf32> to vector<8x256xf32>
    %193 = arith.mulf %189, %192 : vector<8x256xf32>
    %194 = vector.broadcast %188 : vector<8x1xf32> to vector<8x256xf32>
    %195 = arith.mulf %194, %193 : vector<8x256xf32>
    %196 = arith.addf %186, %195 : vector<8x256xf32>
    %c6_125 = arith.constant 6 : index
    %c0_126 = arith.constant 0 : index
    %c0_127 = arith.constant 0 : index
    %197 = vector.load %arg7[%c6_125, %c0_126, %c0_127] : memref<9x8x1xf32, #tpu.memory_space<vmem>>, vector<1x8x1xf32>
    %198 = vector.shape_cast %197 : vector<1x8x1xf32> to vector<8x1xf32>
    %c241_i32_128 = arith.constant 241 : i32
    %199 = tpu.dynamic_rotate %139 by %c241_i32_128 dim 1 : vector<8x256xf32>, i32 -> vector<8x256xf32>
    %c6_129 = arith.constant 6 : index
    %c0_130 = arith.constant 0 : index
    %c0_131 = arith.constant 0 : index
    %200 = vector.load %arg2[%c6_129, %c0_130, %c0_131] : memref<9x1x256xf32, #tpu.memory_space<vmem>>, vector<1x1x256xf32>
    %201 = vector.shape_cast %200 : vector<1x1x256xf32> to vector<1x256xf32>
    %202 = vector.broadcast %201 : vector<1x256xf32> to vector<8x256xf32>
    %203 = arith.mulf %199, %202 : vector<8x256xf32>
    %204 = vector.broadcast %198 : vector<8x1xf32> to vector<8x256xf32>
    %205 = arith.mulf %204, %203 : vector<8x256xf32>
    %206 = arith.addf %196, %205 : vector<8x256xf32>
    %c7_132 = arith.constant 7 : index
    %c0_133 = arith.constant 0 : index
    %c0_134 = arith.constant 0 : index
    %207 = vector.load %arg7[%c7_132, %c0_133, %c0_134] : memref<9x8x1xf32, #tpu.memory_space<vmem>>, vector<1x8x1xf32>
    %208 = vector.shape_cast %207 : vector<1x8x1xf32> to vector<8x1xf32>
    %c240_i32_135 = arith.constant 240 : i32
    %209 = tpu.dynamic_rotate %139 by %c240_i32_135 dim 1 : vector<8x256xf32>, i32 -> vector<8x256xf32>
    %c7_136 = arith.constant 7 : index
    %c0_137 = arith.constant 0 : index
    %c0_138 = arith.constant 0 : index
    %210 = vector.load %arg2[%c7_136, %c0_137, %c0_138] : memref<9x1x256xf32, #tpu.memory_space<vmem>>, vector<1x1x256xf32>
    %211 = vector.shape_cast %210 : vector<1x1x256xf32> to vector<1x256xf32>
    %212 = vector.broadcast %211 : vector<1x256xf32> to vector<8x256xf32>
    %213 = arith.mulf %209, %212 : vector<8x256xf32>
    %214 = vector.broadcast %208 : vector<8x1xf32> to vector<8x256xf32>
    %215 = arith.mulf %214, %213 : vector<8x256xf32>
    %216 = arith.addf %206, %215 : vector<8x256xf32>
    %c8_139 = arith.constant 8 : index
    %c0_140 = arith.constant 0 : index
    %c0_141 = arith.constant 0 : index
    %217 = vector.load %arg7[%c8_139, %c0_140, %c0_141] : memref<9x8x1xf32, #tpu.memory_space<vmem>>, vector<1x8x1xf32>
    %218 = vector.shape_cast %217 : vector<1x8x1xf32> to vector<8x1xf32>
    %c239_i32_142 = arith.constant 239 : i32
    %219 = tpu.dynamic_rotate %139 by %c239_i32_142 dim 1 : vector<8x256xf32>, i32 -> vector<8x256xf32>
    %c8_143 = arith.constant 8 : index
    %c0_144 = arith.constant 0 : index
    %c0_145 = arith.constant 0 : index
    %220 = vector.load %arg2[%c8_143, %c0_144, %c0_145] : memref<9x1x256xf32, #tpu.memory_space<vmem>>, vector<1x1x256xf32>
    %221 = vector.shape_cast %220 : vector<1x1x256xf32> to vector<1x256xf32>
    %222 = vector.broadcast %221 : vector<1x256xf32> to vector<8x256xf32>
    %223 = arith.mulf %219, %222 : vector<8x256xf32>
    %224 = vector.broadcast %218 : vector<8x1xf32> to vector<8x256xf32>
    %225 = arith.mulf %224, %223 : vector<8x256xf32>
    %226 = arith.addf %216, %225 : vector<8x256xf32>
    %cst_146 = arith.constant 0.000000e+00 : f32
    %227 = vector.broadcast %cst_146 : f32 to vector<8x256xf32>
    %228 = arith.maximumf %226, %227 : vector<8x256xf32>
    %c0_147 = arith.constant 0 : index
    %c0_148 = arith.constant 0 : index
    %229 = vector.load %arg9[%c0_147, %c0_148] : memref<8x8xbf16, #tpu.memory_space<vmem>>, vector<8x8xbf16>
    %230 = arith.truncf %139 : vector<8x256xf32> to vector<8x256xbf16>
    %cst_149 = arith.constant dense<0.000000e+00> : vector<8x256xf32>
    %231 = tpu.matmul %229, %230, %cst_149 {dimension_numbers = #tpu.dot_dimension_numbers<[1], [0], [0], [1], [0, 0, 1, 1], [], []>} : vector<8x8xbf16>, vector<8x256xbf16>, vector<8x256xf32> -> vector<8x256xf32>
    %c0_150 = arith.constant 0 : index
    %c0_151 = arith.constant 0 : index
    %232 = vector.load %arg10[%c0_150, %c0_151] : memref<8x8xbf16, #tpu.memory_space<vmem>>, vector<8x8xbf16>
    %233 = arith.truncf %228 : vector<8x256xf32> to vector<8x256xbf16>
    %cst_152 = arith.constant dense<0.000000e+00> : vector<8x256xf32>
    %234 = tpu.matmul %232, %233, %cst_152 {dimension_numbers = #tpu.dot_dimension_numbers<[1], [0], [0], [1], [0, 0, 1, 1], [], []>} : vector<8x8xbf16>, vector<8x256xbf16>, vector<8x256xf32> -> vector<8x256xf32>
    %235 = arith.addf %231, %234 : vector<8x256xf32>
    %c0_153 = arith.constant 0 : index
    %c0_154 = arith.constant 0 : index
    %236 = vector.load %arg11[%c0_153, %c0_154] : memref<8x1xf32, #tpu.memory_space<vmem>>, vector<8x1xf32>
    %237 = vector.broadcast %236 : vector<8x1xf32> to vector<8x256xf32>
    %238 = arith.addf %235, %237 : vector<8x256xf32>
    %239 = arith.addf %238, %1 : vector<8x256xf32>
    %cst_155 = arith.constant 0.000000e+00 : f32
    %240 = vector.broadcast %cst_155 : f32 to vector<8x256xf32>
    %241 = arith.maximumf %239, %240 : vector<8x256xf32>
    %c0_156 = arith.constant 0 : index
    %c0_157 = arith.constant 0 : index
    %c0_158 = arith.constant 0 : index
    %242 = vector.load %arg12[%c0_156, %c0_157, %c0_158] : memref<1x8x256xf32, #tpu.memory_space<vmem>>, vector<1x8x256xf32>
    %243 = vector.shape_cast %242 : vector<1x8x256xf32> to vector<8x256xf32>
    %244 = vector.shape_cast %241 : vector<8x256xf32> to vector<1x8x256xf32>
    tpu.vector_store %arg12[%c0_156, %c0_157, %c0_158], %244 {strides = array<i32>} : memref<1x8x256xf32, #tpu.memory_space<vmem>>, vector<1x8x256xf32>,
    return
  }
  func.func @transform_0(%arg0: i32) -> (i32, i32, i32) {
    %c0_i32 = arith.constant 0 : i32
    %c0_i32_0 = arith.constant 0 : i32
    %c0_i32_1 = arith.constant 0 : i32
    return %arg0, %c0_i32, %c0_i32_0 : i32, i32, i32
  }
  func.func @transform_1(%arg0: i32) -> (i32, i32, i32) {
    %c0_i32 = arith.constant 0 : i32
    %c0_i32_0 = arith.constant 0 : i32
    %c0_i32_1 = arith.constant 0 : i32
    %c0_i32_2 = arith.constant 0 : i32
    return %c0_i32, %c0_i32_0, %c0_i32_1 : i32, i32, i32
  }
  func.func @transform_2(%arg0: i32) -> (i32, i32) {
    %c0_i32 = arith.constant 0 : i32
    %c0_i32_0 = arith.constant 0 : i32
    %c0_i32_1 = arith.constant 0 : i32
    return %c0_i32, %c0_i32_0 : i32, i32
  }
  func.func @transform_3(%arg0: i32) -> (i32, i32) {
    %c0_i32 = arith.constant 0 : i32
    %c0_i32_0 = arith.constant 0 : i32
    %c0_i32_1 = arith.constant 0 : i32
    return %c0_i32, %c0_i32_0 : i32, i32
  }
  func.func @transform_4(%arg0: i32) -> (i32, i32, i32) {
    %c0_i32 = arith.constant 0 : i32
    %c0_i32_0 = arith.constant 0 : i32
    %c0_i32_1 = arith.constant 0 : i32
    %c0_i32_2 = arith.constant 0 : i32
    return %c0_i32, %c0_i32_0, %c0_i32_1 : i32, i32, i32
  }
  func.func @transform_5(%arg0: i32) -> (i32, i32) {
    %c0_i32 = arith.constant 0 : i32
    %c0_i32_0 = arith.constant 0 : i32
    %c0_i32_1 = arith.constant 0 : i32
    return %c0_i32, %c0_i32_0 : i32, i32
  }
  func.func @transform_6(%arg0: i32) -> (i32, i32, i32) {
    %c0_i32 = arith.constant 0 : i32
    %c0_i32_0 = arith.constant 0 : i32
    %c0_i32_1 = arith.constant 0 : i32
    %c0_i32_2 = arith.constant 0 : i32
    return %c0_i32, %c0_i32_0, %c0_i32_1 : i32, i32, i32
  }
  func.func @transform_7(%arg0: i32) -> (i32, i32) {
    %c0_i32 = arith.constant 0 : i32
    %c0_i32_0 = arith.constant 0 : i32
    %c0_i32_1 = arith.constant 0 : i32
    return %c0_i32, %c0_i32_0 : i32, i32
  }
  func.func @transform_8(%arg0: i32) -> (i32, i32) {
    %c0_i32 = arith.constant 0 : i32
    %c0_i32_0 = arith.constant 0 : i32
    %c0_i32_1 = arith.constant 0 : i32
    return %c0_i32, %c0_i32_0 : i32, i32
  }
  func.func @transform_9(%arg0: i32) -> (i32, i32) {
    %c0_i32 = arith.constant 0 : i32
    %c0_i32_0 = arith.constant 0 : i32
    %c0_i32_1 = arith.constant 0 : i32
    return %c0_i32, %c0_i32_0 : i32, i32
  }
  func.func @transform_10(%arg0: i32) -> (i32, i32) {
    %c0_i32 = arith.constant 0 : i32
    %c0_i32_0 = arith.constant 0 : i32
    %c0_i32_1 = arith.constant 0 : i32
    return %c0_i32, %c0_i32_0 : i32, i32
  }
  func.func @transform_11(%arg0: i32) -> (i32, i32, i32) {
    %c0_i32 = arith.constant 0 : i32
    %c0_i32_0 = arith.constant 0 : i32
    %c0_i32_1 = arith.constant 0 : i32
    return %arg0, %c0_i32, %c0_i32_0 : i32, i32, i32
  }
}

</mosaic_0001>

<llo_original>
// kernel: tpu_custom_call.1
$region0: #{tpu_custom_call.1}
  #allocation0 [shape = 'u32[]', space=smem, size = 0x4, offset = 0x4, fixed_abs, tag = 'smem constant byte address 0x4 - core index']
  #allocation1 [shape = 'u32[144,128]{1,0:T(1,128)}', space=vmem, size = 0x12000, scoped, tag = 'internal scratch']
  %s0 = inlined_call_operand.vmem [shape: f32[1,8,256], index: 0, kind: input, shape index: {}]
  %s1 = inlined_call_operand.vmem [shape: f32[9,1,256], index: 1, kind: input, shape index: {}]
  %s2 = inlined_call_operand.vmem [shape: bf16[8,72], index: 2, kind: input, shape index: {}]
  %s3 = inlined_call_operand.vmem [shape: f32[8,1], index: 3, kind: input, shape index: {}]
  %s4 = inlined_call_operand.vmem [shape: f32[9,8,1], index: 4, kind: input, shape index: {}]
  %s5 = inlined_call_operand.vmem [shape: f32[8,1], index: 5, kind: input, shape index: {}]
  %s6 = inlined_call_operand.vmem [shape: f32[9,8,1], index: 6, kind: input, shape index: {}]
  %s7 = inlined_call_operand.vmem [shape: f32[8,1], index: 7, kind: input, shape index: {}]
  %s8 = inlined_call_operand.vmem [shape: bf16[8,8], index: 8, kind: input, shape index: {}]
  %s9 = inlined_call_operand.vmem [shape: bf16[8,8], index: 9, kind: input, shape index: {}]
  %s10 = inlined_call_operand.vmem [shape: f32[8,1], index: 10, kind: input, shape index: {}]
  %s11 = inlined_call_operand.hbm [shape: f32[1,8,256], index: 11, kind: output, shape index: {}]
  %s12 = sld [smem:[#allocation0]]
  $region54: #{tpu_custom_call.1} parent=0
    _
  %s14 = ssub.s32 1, %s12
  %s15 = scalar_select 0, %s14, %s12
  $region1: #{tpu_custom_call.1} parent=0
    #allocation2 [shape = 'u8[8192]{0}', space=vmem, size = 0x2000, scoped, tag = 'output window, operand 0, single buffered']
    #allocation3 [shape = 's32[1]{0}', space=sflag, size = 0x4, scoped, tag = 'scoped memory for tpu_custom_call.1']
    %16 = vsyncpa [#allocation3], 0
    // Predicated region
    $region2: #{tpu_custom_call.1} parent=1 // pred_check
      _
    $region3: #{tpu_custom_call.1} parent=1 // pred_check_branch
      %18 = sbr.rel (0) target = $region5
    $region4: #{tpu_custom_call.1} parent=1 // pred_region
      _
    $region5: #{tpu_custom_call.1} parent=1 // pred_fallthru
      _
    // Predicated region
    $region6: #{tpu_custom_call.1} parent=1 // pred_check
      _
    $region7: #{tpu_custom_call.1} parent=1 // pred_check_branch
      %20 = sbr.rel (0) target = $region9
    $region8: #{tpu_custom_call.1} parent=1 // pred_region
      _
    $region9: #{tpu_custom_call.1} parent=1 // pred_fallthru
      _
    // Predicated region
    $region10: #{tpu_custom_call.1} parent=1 // pred_check
      _
    $region11: #{tpu_custom_call.1} parent=1 // pred_check_branch
      %22 = sbr.rel (0) target = $region13
    $region12: #{tpu_custom_call.1} parent=1 // pred_region
      _
    $region13: #{tpu_custom_call.1} parent=1 // pred_fallthru
      _
    // Predicated region
    $region14: #{tpu_custom_call.1} parent=1 // pred_check
      _
    $region15: #{tpu_custom_call.1} parent=1 // pred_check_branch
      %24 = sbr.rel (0) target = $region17
    $region16: #{tpu_custom_call.1} parent=1 // pred_region
      _
    $region17: #{tpu_custom_call.1} parent=1 // pred_fallthru
      _
    // Predicated region
    $region18: #{tpu_custom_call.1} parent=1 // pred_check
      _
    $region19: #{tpu_custom_call.1} parent=1 // pred_check_branch
      %26 = sbr.rel (0) target = $region21
    $region20: #{tpu_custom_call.1} parent=1 // pred_region
      _
    $region21: #{tpu_custom_call.1} parent=1 // pred_fallthru
      _
    // Predicated region
    $region22: #{tpu_custom_call.1} parent=1 // pred_check
      _
    $region23: #{tpu_custom_call.1} parent=1 // pred_check_branch
      %28 = sbr.rel (0) target = $region25
    $region24: #{tpu_custom_call.1} parent=1 // pred_region
      _
    $region25: #{tpu_custom_call.1} parent=1 // pred_fallthru
      _
    // Predicated region
    $region26: #{tpu_custom_call.1} parent=1 // pred_check
      _
    $region27: #{tpu_custom_call.1} parent=1 // pred_check_branch
      %30 = sbr.rel (0) target = $region29
    $region28: #{tpu_custom_call.1} parent=1 // pred_region
      _
    $region29: #{tpu_custom_call.1} parent=1 // pred_fallthru
      _
    // Predicated region
    $region30: #{tpu_custom_call.1} parent=1 // pred_check
      _
    $region31: #{tpu_custom_call.1} parent=1 // pred_check_branch
      %32 = sbr.rel (0) target = $region33
    $region32: #{tpu_custom_call.1} parent=1 // pred_region
      _
    $region33: #{tpu_custom_call.1} parent=1 // pred_fallthru
      _
    // Predicated region
    $region34: #{tpu_custom_call.1} parent=1 // pred_check
      _
    $region35: #{tpu_custom_call.1} parent=1 // pred_check_branch
      %34 = sbr.rel (0) target = $region37
    $region36: #{tpu_custom_call.1} parent=1 // pred_region
      _
    $region37: #{tpu_custom_call.1} parent=1 // pred_fallthru
      _
    // Predicated region
    $region38: #{tpu_custom_call.1} parent=1 // pred_check
      _
    $region39: #{tpu_custom_call.1} parent=1 // pred_check_branch
      %36 = sbr.rel (0) target = $region41
    $region40: #{tpu_custom_call.1} parent=1 // pred_region
      _
    $region41: #{tpu_custom_call.1} parent=1 // pred_fallthru
      _
    // Predicated region
    $region42: #{tpu_custom_call.1} parent=1 // pred_check
      _
    $region43: #{tpu_custom_call.1} parent=1 // pred_check_branch
      %38 = sbr.rel (0) target = $region45
    $region44: #{tpu_custom_call.1} parent=1 // pred_region
      _
    $region45: #{tpu_custom_call.1} parent=1 // pred_fallthru
      _
    %v40 = vld [vmem:[%s0] sm:$0xff]
    %v41 = vld [vmem:[%s0 + $0x8] sm:$0xff]
    %42 = vrot.lane.b32.xlu0 %v40, 17
    %v43 = vpop.permute.xlu0 %42
    %44 = vrot.lane.b32.xlu0 %v41, 17
    %v45 = vpop.permute.xlu0 %44
    %v46 = vlaneseq
    %v47 = vand.u32 %v46, 127
    %vm48 = vcmp.lt.s32.totalorder %v47, 17
    %v49 = vsel %vm48, %v43, %v45
    %v50 = vsel %vm48, %v45, %v43
    %v51 = vld [vmem:[%s1] sm:$0x3]
    %v53 = vlaneseq
    %v54 = vshrl.u32 %v53, 7
    %v55 = vsub.s32 0, %v54
    %v56 = vrot.slane %v51, %v55
    %v57 = vlaneseq
    %v58 = vshrl.u32 %v57, 7
    %v59 = vsub.s32 1, %v58
    %v60 = vrot.slane %v51, %v59
    %v63 = vmul.f32 %v50, %v56
    %v64 = vmul.f32 %v49, %v60
    %65 = vrot.lane.b32.xlu0 %v40, 16
    %v66 = vpop.permute.xlu0 %65
    %67 = vrot.lane.b32.xlu0 %v41, 16
    %v68 = vpop.permute.xlu0 %67
    %vm69 = vcmp.lt.s32.totalorder %v47, 16
    %v70 = vsel %vm69, %v66, %v68
    %v71 = vsel %vm69, %v68, %v66
    %s72 = scalar_lea.vmem %s1, 2
    %v73 = vld [vmem:[%s72] sm:$0x3]
    %v75 = vlaneseq
    %v76 = vshrl.u32 %v75, 7
    %v77 = vsub.s32 0, %v76
    %v78 = vrot.slane %v73, %v77
    %v79 = vlaneseq
    %v80 = vshrl.u32 %v79, 7
    %v81 = vsub.s32 1, %v80
    %v82 = vrot.slane %v73, %v81
    %v85 = vmul.f32 %v71, %v78
    %v86 = vmul.f32 %v70, %v82
    %87 = vrot.lane.b32.xlu0 %v40, 15
    %v88 = vpop.permute.xlu0 %87
    %89 = vrot.lane.b32.xlu0 %v41, 15
    %v90 = vpop.permute.xlu0 %89
    %vm91 = vcmp.lt.s32.totalorder %v47, 15
    %v92 = vsel %vm91, %v88, %v90
    %v93 = vsel %vm91, %v90, %v88
    %s94 = scalar_lea.vmem %s1, 4
    %v95 = vld [vmem:[%s94] sm:$0x3]
    %v97 = vlaneseq
    %v98 = vshrl.u32 %v97, 7
    %v99 = vsub.s32 0, %v98
    %v100 = vrot.slane %v95, %v99
    %v101 = vlaneseq
    %v102 = vshrl.u32 %v101, 7
    %v103 = vsub.s32 1, %v102
    %v104 = vrot.slane %v95, %v103
    %v107 = vmul.f32 %v93, %v100
    %v108 = vmul.f32 %v92, %v104
    %109 = vrot.lane.b32.xlu0 %v40, 1
    %v110 = vpop.permute.xlu0 %109
    %111 = vrot.lane.b32.xlu0 %v41, 1
    %v112 = vpop.permute.xlu0 %111
    %vm113 = vcmp.lt.s32.totalorder %v47, 1
    %v114 = vsel %vm113, %v110, %v112
    %v115 = vsel %vm113, %v112, %v110
    %s116 = scalar_lea.vmem %s1, 6
    %v117 = vld [vmem:[%s116] sm:$0x3]
    %v119 = vlaneseq
    %v120 = vshrl.u32 %v119, 7
    %v121 = vsub.s32 0, %v120
    %v122 = vrot.slane %v117, %v121
    %v123 = vlaneseq
    %v124 = vshrl.u32 %v123, 7
    %v125 = vsub.s32 1, %v124
    %v126 = vrot.slane %v117, %v125
    %v129 = vmul.f32 %v115, %v122
    %v130 = vmul.f32 %v114, %v126
    %131 = vrot.lane.b32.xlu0 %v40, 127
    %v132 = vpop.permute.xlu0 %131
    %133 = vrot.lane.b32.xlu0 %v41, 127
    %v134 = vpop.permute.xlu0 %133
    %vm135 = vcmp.lt.s32.totalorder %v47, 127
    %v136 = vsel %vm135, %v132, %v134
    %v137 = vsel %vm135, %v134, %v132
    %s138 = scalar_lea.vmem %s1, 10
    %v139 = vld [vmem:[%s138] sm:$0x3]
    %v141 = vlaneseq
    %v142 = vshrl.u32 %v141, 7
    %v143 = vsub.s32 0, %v142
    %v144 = vrot.slane %v139, %v143
    %v145 = vlaneseq
    %v146 = vshrl.u32 %v145, 7
    %v147 = vsub.s32 1, %v146
    %v148 = vrot.slane %v139, %v147
    %v151 = vmul.f32 %v136, %v144
    %v152 = vmul.f32 %v137, %v148
    %153 = vrot.lane.b32.xlu0 %v40, 113
    %v154 = vpop.permute.xlu0 %153
    %155 = vrot.lane.b32.xlu0 %v41, 113
    %v156 = vpop.permute.xlu0 %155
    %vm157 = vcmp.lt.s32.totalorder %v47, 113
    %v158 = vsel %vm157, %v154, %v156
    %v159 = vsel %vm157, %v156, %v154
    %s160 = scalar_lea.vmem %s1, 12
    %v161 = vld [vmem:[%s160] sm:$0x3]
    %v163 = vlaneseq
    %v164 = vshrl.u32 %v163, 7
    %v165 = vsub.s32 0, %v164
    %v166 = vrot.slane %v161, %v165
    %v167 = vlaneseq
    %v168 = vshrl.u32 %v167, 7
    %v169 = vsub.s32 1, %v168
    %v170 = vrot.slane %v161, %v169
    %v173 = vmul.f32 %v158, %v166
    %v174 = vmul.f32 %v159, %v170
    %175 = vrot.lane.b32.xlu0 %v40, 112
    %v176 = vpop.permute.xlu0 %175
    %177 = vrot.lane.b32.xlu0 %v41, 112
    %v178 = vpop.permute.xlu0 %177
    %vm179 = vcmp.lt.s32.totalorder %v47, 112
    %v180 = vsel %vm179, %v176, %v178
    %v181 = vsel %vm179, %v178, %v176
    %s182 = scalar_lea.vmem %s1, 14
    %v183 = vld [vmem:[%s182] sm:$0x3]
    %v185 = vlaneseq
    %v186 = vshrl.u32 %v185, 7
    %v187 = vsub.s32 0, %v186
    %v188 = vrot.slane %v183, %v187
    %v189 = vlaneseq
    %v190 = vshrl.u32 %v189, 7
    %v191 = vsub.s32 1, %v190
    %v192 = vrot.slane %v183, %v191
    %v195 = vmul.f32 %v180, %v188
    %v196 = vmul.f32 %v181, %v192
    %197 = vrot.lane.b32.xlu0 %v40, 111
    %v198 = vpop.permute.xlu0 %197
    %199 = vrot.lane.b32.xlu0 %v41, 111
    %v200 = vpop.permute.xlu0 %199
    %vm201 = vcmp.lt.s32.totalorder %v47, 111
    %v202 = vsel %vm201, %v198, %v200
    %v203 = vsel %vm201, %v200, %v198
    %s204 = scalar_lea.vmem %s1, 16
    %v205 = vld [vmem:[%s204] sm:$0x3]
    %v207 = vlaneseq
    %v208 = vshrl.u32 %v207, 7
    %v209 = vsub.s32 0, %v208
    %v210 = vrot.slane %v205, %v209
    %v211 = vlaneseq
    %v212 = vshrl.u32 %v211, 7
    %v213 = vsub.s32 1, %v212
    %v214 = vrot.slane %v205, %v213
    %v217 = vmul.f32 %v202, %v210
    %v218 = vmul.f32 %v203, %v214
    %v219 = vld [vmem:[%s2] sm:$0xf]
    %v220 = vpack.c.bf16 %v85, %v63
    %v221 = vpack.c.bf16 %v86, %v64
    %v222 = vpack.c.bf16 %v129, %v107
    %v223 = vpack.c.bf16 %v130, %v108
    %v224 = vpack.c.bf16 %v151, %v40
    %v225 = vpack.c.bf16 %v152, %v41
    %v226 = vpack.c.bf16 %v195, %v173
    %v227 = vpack.c.bf16 %v196, %v174
    %v228 = vpack.c.bf16 %v217, %v217
    %v229 = vpack.c.bf16 %v218, %v218
    %v230 = vld [vmem:[%s3] sm:$0xff]
    %232 = vset.pattern.permute.xlu0 0
    %233 = vperm.xlu0 %232, %v230
    %v234 = vpop.permute.xlu0 %233
    %vm236 = vcmask 588800
    %v238 = vsel %vm236, %v219, 0
    %vm240 = vcmask 1043456
    %v242 = vsel %vm240, %v228, 0
    %v245 = vsel %vm240, %v229, 0
    %247 = vmatprep.subr.bf16.mxu0 %v221
    %248 = vmatpush1.bf16.msra.mxu0 %v220
    %249 = vmatprep.subr.bf16.mxu0 %v223
    %250 = vmatpush1.bf16.msra.mxu0 %v222
    %251 = vmatprep.subr.bf16.mxu0 %v225
    %252 = vmatpush1.bf16.msra.mxu0 %v224
    %253 = vmatprep.subr.bf16.mxu0 %v227
    %254 = vmatpush1.bf16.msra.mxu0 %v226
    %255 = vmatprep.subr.bf16.mxu0 %v245
    %256 = vmatpush1.bf16.msra.mxu0 %v242
    %257 = vmatprep.subr.bf16.mxu0 0
    %258 = vmatpush1.bf16.msra.mxu0 0
    %259 = vmatprep.subr.bf16.mxu0 0
    %260 = vmatpush1.bf16.msra.mxu0 0
    %261 = vmatprep.subr.bf16.mxu0 0
    %262 = vmatpush1.bf16.msra.mxu0 0
    %263 = vmatprep.subr.bf16.mxu0 0
    %264 = vmatpush1.bf16.msra.mxu0 0
    %265 = vmatprep.subr.bf16.mxu0 0
    %266 = vmatpush1.bf16.msra.mxu0 0
    %267 = vmatprep.subr.bf16.mxu0 0
    %268 = vmatpush1.bf16.msra.mxu0 0
    %269 = vmatprep.subr.bf16.mxu0 0
    %270 = vmatpush1.bf16.msra.mxu0 0
    %271 = vmatprep.subr.bf16.mxu0 0
    %272 = vmatpush1.bf16.msra.mxu0 0
    %273 = vmatprep.subr.bf16.mxu0 0
    %274 = vmatpush1.bf16.msra.mxu0 0
    %275 = vmatprep.subr.bf16.mxu0 0
    %276 = vmatpush1.bf16.msra.mxu0 0
    %277 = vmatprep.subr.bf16.mxu0 0
    %278 = vmatpush1.bf16.msra.mxu0 0
    %279 = vmatprep.mubr.bf16.mxu0 0
    %280 = vmatmul.mubr.bf16.gmra.mrb[0].mxu0 %v238
    %v281 = vpop.f32.mrb[0].mxu0
    %v282 = vadd.f32 %v234, %v281
    %v283 = vpop.f32.mrb[0].mxu0
    %v284 = vadd.f32 %v234, %v283
    %v285 = vpop.f32.mrb[0].mxu0
    %v286 = vpop.f32.mrb[0].mxu0
    %287 = vdwg.mxu0
    %v288 = vmax.f32 %v282, 0.0
    %v289 = vmax.f32 %v284, 0.0
    %v290 = vld [vmem:[%s4] sm:$0xff]
    %291 = vrot.lane.b32.xlu0 %v288, 17
    %v292 = vpop.permute.xlu0 %291
    %293 = vrot.lane.b32.xlu0 %v289, 17
    %v294 = vpop.permute.xlu0 %293
    %v295 = vsel %vm48, %v292, %v294
    %v296 = vsel %vm48, %v294, %v292
    %v297 = vmul.f32 %v296, %v56
    %v298 = vmul.f32 %v295, %v60
    %300 = vset.pattern.permute.xlu0 0
    %301 = vperm.xlu0 %300, %v290
    %v302 = vpop.permute.xlu0 %301
    %v304 = vmul.f32 %v302, %v297
    %v305 = vmul.f32 %v302, %v298
    %v306 = vld [vmem:[%s5] sm:$0xff]
    %308 = vset.pattern.permute.xlu0 0
    %309 = vperm.xlu0 %308, %v306
    %v310 = vpop.permute.xlu0 %309
    %v312 = vadd.f32 %v304, %v310
    %v313 = vadd.f32 %v305, %v310
    %s314 = scalar_lea.vmem %s4, 8
    %v315 = vld [vmem:[%s314] sm:$0xff]
    %316 = vrot.lane.b32.xlu0 %v288, 16
    %v317 = vpop.permute.xlu0 %316
    %318 = vrot.lane.b32.xlu0 %v289, 16
    %v319 = vpop.permute.xlu0 %318
    %v320 = vsel %vm69, %v317, %v319
    %v321 = vsel %vm69, %v319, %v317
    %v322 = vmul.f32 %v321, %v78
    %v323 = vmul.f32 %v320, %v82
    %325 = vset.pattern.permute.xlu0 0
    %326 = vperm.xlu0 %325, %v315
    %v327 = vpop.permute.xlu0 %326
    %v329 = vmul.f32 %v327, %v322
    %v330 = vmul.f32 %v327, %v323
    %v331 = vadd.f32 %v312, %v329
    %v332 = vadd.f32 %v313, %v330
    %s333 = scalar_lea.vmem %s4, 16
    %v334 = vld [vmem:[%s333] sm:$0xff]
    %335 = vrot.lane.b32.xlu0 %v288, 15
    %v336 = vpop.permute.xlu0 %335
    %337 = vrot.lane.b32.xlu0 %v289, 15
    %v338 = vpop.permute.xlu0 %337
    %v339 = vsel %vm91, %v336, %v338
    %v340 = vsel %vm91, %v338, %v336
    %v341 = vmul.f32 %v340, %v100
    %v342 = vmul.f32 %v339, %v104
    %344 = vset.pattern.permute.xlu0 0
    %345 = vperm.xlu0 %344, %v334
    %v346 = vpop.permute.xlu0 %345
    %v348 = vmul.f32 %v346, %v341
    %v349 = vmul.f32 %v346, %v342
    %v350 = vadd.f32 %v331, %v348
    %v351 = vadd.f32 %v332, %v349
    %s352 = scalar_lea.vmem %s4, 24
    %v353 = vld [vmem:[%s352] sm:$0xff]
    %354 = vrot.lane.b32.xlu0 %v288, 1
    %v355 = vpop.permute.xlu0 %354
    %356 = vrot.lane.b32.xlu0 %v289, 1
    %v357 = vpop.permute.xlu0 %356
    %v358 = vsel %vm113, %v355, %v357
    %v359 = vsel %vm113, %v357, %v355
    %v360 = vmul.f32 %v359, %v122
    %v361 = vmul.f32 %v358, %v126
    %363 = vset.pattern.permute.xlu0 0
    %364 = vperm.xlu0 %363, %v353
    %v365 = vpop.permute.xlu0 %364
    %v367 = vmul.f32 %v365, %v360
    %v368 = vmul.f32 %v365, %v361
    %v369 = vadd.f32 %v350, %v367
    %v370 = vadd.f32 %v351, %v368
    %s371 = scalar_lea.vmem %s4, 32
    %v372 = vld [vmem:[%s371] sm:$0xff]
    %374 = vset.pattern.permute.xlu0 0
    %375 = vperm.xlu0 %374, %v372
    %v376 = vpop.permute.xlu0 %375
    %v378 = vmul.f32 %v376, %v288
    %v379 = vmul.f32 %v376, %v289
    %v380 = vadd.f32 %v369, %v378
    %v381 = vadd.f32 %v370, %v379
    %s382 = scalar_lea.vmem %s4, 40
    %v383 = vld [vmem:[%s382] sm:$0xff]
    %384 = vrot.lane.b32.xlu0 %v288, 127
    %v385 = vpop.permute.xlu0 %384
    %386 = vrot.lane.b32.xlu0 %v289, 127
    %v387 = vpop.permute.xlu0 %386
    %v388 = vsel %vm135, %v385, %v387
    %v389 = vsel %vm135, %v387, %v385
    %v390 = vmul.f32 %v388, %v144
    %v391 = vmul.f32 %v389, %v148
    %393 = vset.pattern.permute.xlu0 0
    %394 = vperm.xlu0 %393, %v383
    %v395 = vpop.permute.xlu0 %394
    %v397 = vmul.f32 %v395, %v390
    %v398 = vmul.f32 %v395, %v391
    %v399 = vadd.f32 %v380, %v397
    %v400 = vadd.f32 %v381, %v398
    %s401 = scalar_lea.vmem %s4, 48
    %v402 = vld [vmem:[%s401] sm:$0xff]
    %403 = vrot.lane.b32.xlu0 %v288, 113
    %v404 = vpop.permute.xlu0 %403
    %405 = vrot.lane.b32.xlu0 %v289, 113
    %v406 = vpop.permute.xlu0 %405
    %v407 = vsel %vm157, %v404, %v406
    %v408 = vsel %vm157, %v406, %v404
    %v409 = vmul.f32 %v407, %v166
    %v410 = vmul.f32 %v408, %v170
    %412 = vset.pattern.permute.xlu0 0
    %413 = vperm.xlu0 %412, %v402
    %v414 = vpop.permute.xlu0 %413
    %v416 = vmul.f32 %v414, %v409
    %v417 = vmul.f32 %v414, %v410
    %v418 = vadd.f32 %v399, %v416
    %v419 = vadd.f32 %v400, %v417
    %s420 = scalar_lea.vmem %s4, 56
    %v421 = vld [vmem:[%s420] sm:$0xff]
    %422 = vrot.lane.b32.xlu0 %v288, 112
    %v423 = vpop.permute.xlu0 %422
    %424 = vrot.lane.b32.xlu0 %v289, 112
    %v425 = vpop.permute.xlu0 %424
    %v426 = vsel %vm179, %v423, %v425
    %v427 = vsel %vm179, %v425, %v423
    %v428 = vmul.f32 %v426, %v188
    %v429 = vmul.f32 %v427, %v192
    %431 = vset.pattern.permute.xlu0 0
    %432 = vperm.xlu0 %431, %v421
    %v433 = vpop.permute.xlu0 %432
    %v435 = vmul.f32 %v433, %v428
    %v436 = vmul.f32 %v433, %v429
    %v437 = vadd.f32 %v418, %v435
    %v438 = vadd.f32 %v419, %v436
    %s439 = scalar_lea.vmem %s4, 64
    %v440 = vld [vmem:[%s439] sm:$0xff]
    %441 = vrot.lane.b32.xlu0 %v288, 111
    %v442 = vpop.permute.xlu0 %441
    %443 = vrot.lane.b32.xlu0 %v289, 111
    %v444 = vpop.permute.xlu0 %443
    %v445 = vsel %vm201, %v442, %v444
    %v446 = vsel %vm201, %v444, %v442
    %v447 = vmul.f32 %v445, %v210
    %v448 = vmul.f32 %v446, %v214
    %450 = vset.pattern.permute.xlu0 0
    %451 = vperm.xlu0 %450, %v440
    %v452 = vpop.permute.xlu0 %451
    %v454 = vmul.f32 %v452, %v447
    %v455 = vmul.f32 %v452, %v448
    %v456 = vadd.f32 %v437, %v454
    %v457 = vadd.f32 %v438, %v455
    %v458 = vmax.f32 %v456, 0.0
    %v459 = vmax.f32 %v457, 0.0
    %v460 = vld [vmem:[%s6] sm:$0xff]
    %461 = vrot.lane.b32.xlu0 %v458, 17
    %v462 = vpop.permute.xlu0 %461
    %463 = vrot.lane.b32.xlu0 %v459, 17
    %v464 = vpop.permute.xlu0 %463
    %v465 = vsel %vm48, %v462, %v464
    %v466 = vsel %vm48, %v464, %v462
    %v467 = vmul.f32 %v466, %v56
    %v468 = vmul.f32 %v465, %v60
    %470 = vset.pattern.permute.xlu0 0
    %471 = vperm.xlu0 %470, %v460
    %v472 = vpop.permute.xlu0 %471
    %v474 = vmul.f32 %v472, %v467
    %v475 = vmul.f32 %v472, %v468
    %v476 = vld [vmem:[%s7] sm:$0xff]
    %478 = vset.pattern.permute.xlu0 0
    %479 = vperm.xlu0 %478, %v476
    %v480 = vpop.permute.xlu0 %479
    %v482 = vadd.f32 %v474, %v480
    %v483 = vadd.f32 %v475, %v480
    %s484 = scalar_lea.vmem %s6, 8
    %v485 = vld [vmem:[%s484] sm:$0xff]
    %486 = vrot.lane.b32.xlu0 %v458, 16
    %v487 = vpop.permute.xlu0 %486
    %488 = vrot.lane.b32.xlu0 %v459, 16
    %v489 = vpop.permute.xlu0 %488
    %v490 = vsel %vm69, %v487, %v489
    %v491 = vsel %vm69, %v489, %v487
    %v492 = vmul.f32 %v491, %v78
    %v493 = vmul.f32 %v490, %v82
    %495 = vset.pattern.permute.xlu0 0
    %496 = vperm.xlu0 %495, %v485
    %v497 = vpop.permute.xlu0 %496
    %v499 = vmul.f32 %v497, %v492
    %v500 = vmul.f32 %v497, %v493
    %v501 = vadd.f32 %v482, %v499
    %v502 = vadd.f32 %v483, %v500
    %s503 = scalar_lea.vmem %s6, 16
    %v504 = vld [vmem:[%s503] sm:$0xff]
    %505 = vrot.lane.b32.xlu0 %v458, 15
    %v506 = vpop.permute.xlu0 %505
    %507 = vrot.lane.b32.xlu0 %v459, 15
    %v508 = vpop.permute.xlu0 %507
    %v509 = vsel %vm91, %v506, %v508
    %v510 = vsel %vm91, %v508, %v506
    %v511 = vmul.f32 %v510, %v100
    %v512 = vmul.f32 %v509, %v104
    %514 = vset.pattern.permute.xlu0 0
    %515 = vperm.xlu0 %514, %v504
    %v516 = vpop.permute.xlu0 %515
    %v518 = vmul.f32 %v516, %v511
    %v519 = vmul.f32 %v516, %v512
    %v520 = vadd.f32 %v501, %v518
    %v521 = vadd.f32 %v502, %v519
    %s522 = scalar_lea.vmem %s6, 24
    %v523 = vld [vmem:[%s522] sm:$0xff]
    %524 = vrot.lane.b32.xlu0 %v458, 1
    %v525 = vpop.permute.xlu0 %524
    %526 = vrot.lane.b32.xlu0 %v459, 1
    %v527 = vpop.permute.xlu0 %526
    %v528 = vsel %vm113, %v525, %v527
    %v529 = vsel %vm113, %v527, %v525
    %v530 = vmul.f32 %v529, %v122
    %v531 = vmul.f32 %v528, %v126
    %533 = vset.pattern.permute.xlu0 0
    %534 = vperm.xlu0 %533, %v523
    %v535 = vpop.permute.xlu0 %534
    %v537 = vmul.f32 %v535, %v530
    %v538 = vmul.f32 %v535, %v531
    %v539 = vadd.f32 %v520, %v537
    %v540 = vadd.f32 %v521, %v538
    %s541 = scalar_lea.vmem %s6, 32
    %v542 = vld [vmem:[%s541] sm:$0xff]
    %544 = vset.pattern.permute.xlu0 0
    %545 = vperm.xlu0 %544, %v542
    %v546 = vpop.permute.xlu0 %545
    %v548 = vmul.f32 %v546, %v458
    %v549 = vmul.f32 %v546, %v459
    %v550 = vadd.f32 %v539, %v548
    %v551 = vadd.f32 %v540, %v549
    %s552 = scalar_lea.vmem %s6, 40
    %v553 = vld [vmem:[%s552] sm:$0xff]
    %554 = vrot.lane.b32.xlu0 %v458, 127
    %v555 = vpop.permute.xlu0 %554
    %556 = vrot.lane.b32.xlu0 %v459, 127
    %v557 = vpop.permute.xlu0 %556
    %v558 = vsel %vm135, %v555, %v557
    %v559 = vsel %vm135, %v557, %v555
    %v560 = vmul.f32 %v558, %v144
    %v561 = vmul.f32 %v559, %v148
    %563 = vset.pattern.permute.xlu0 0
    %564 = vperm.xlu0 %563, %v553
    %v565 = vpop.permute.xlu0 %564
    %v567 = vmul.f32 %v565, %v560
    %v568 = vmul.f32 %v565, %v561
    %v569 = vadd.f32 %v550, %v567
    %v570 = vadd.f32 %v551, %v568
    %s571 = scalar_lea.vmem %s6, 48
    %v572 = vld [vmem:[%s571] sm:$0xff]
    %573 = vrot.lane.b32.xlu0 %v458, 113
    %v574 = vpop.permute.xlu0 %573
    %575 = vrot.lane.b32.xlu0 %v459, 113
    %v576 = vpop.permute.xlu0 %575
    %v577 = vsel %vm157, %v574, %v576
    %v578 = vsel %vm157, %v576, %v574
    %v579 = vmul.f32 %v577, %v166
    %v580 = vmul.f32 %v578, %v170
    %582 = vset.pattern.permute.xlu0 0
    %583 = vperm.xlu0 %582, %v572
    %v584 = vpop.permute.xlu0 %583
    %v586 = vmul.f32 %v584, %v579
    %v587 = vmul.f32 %v584, %v580
    %v588 = vadd.f32 %v569, %v586
    %v589 = vadd.f32 %v570, %v587
    %s590 = scalar_lea.vmem %s6, 56
    %v591 = vld [vmem:[%s590] sm:$0xff]
    %592 = vrot.lane.b32.xlu0 %v458, 112
    %v593 = vpop.permute.xlu0 %592
    %594 = vrot.lane.b32.xlu0 %v459, 112
    %v595 = vpop.permute.xlu0 %594
    %v596 = vsel %vm179, %v593, %v595
    %v597 = vsel %vm179, %v595, %v593
    %v598 = vmul.f32 %v596, %v188
    %v599 = vmul.f32 %v597, %v192
    %601 = vset.pattern.permute.xlu0 0
    %602 = vperm.xlu0 %601, %v591
    %v603 = vpop.permute.xlu0 %602
    %v605 = vmul.f32 %v603, %v598
    %v606 = vmul.f32 %v603, %v599
    %v607 = vadd.f32 %v588, %v605
    %v608 = vadd.f32 %v589, %v606
    %s609 = scalar_lea.vmem %s6, 64
    %v610 = vld [vmem:[%s609] sm:$0xff]
    %611 = vrot.lane.b32.xlu0 %v458, 111
    %v612 = vpop.permute.xlu0 %611
    %613 = vrot.lane.b32.xlu0 %v459, 111
    %v614 = vpop.permute.xlu0 %613
    %v615 = vsel %vm201, %v612, %v614
    %v616 = vsel %vm201, %v614, %v612
    %v617 = vmul.f32 %v615, %v210
    %v618 = vmul.f32 %v616, %v214
    %620 = vset.pattern.permute.xlu0 0
    %621 = vperm.xlu0 %620, %v610
    %v622 = vpop.permute.xlu0 %621
    %v624 = vmul.f32 %v622, %v617
    %v625 = vmul.f32 %v622, %v618
    %v626 = vadd.f32 %v607, %v624
    %v627 = vadd.f32 %v608, %v625
    %v628 = vmax.f32 %v626, 0.0
    %v629 = vmax.f32 %v627, 0.0
    %v630 = vld [vmem:[%s8] sm:$0xf]
    %v631 = vpack.c.bf16 %v458, %v458
    %v632 = vpack.c.bf16 %v459, %v459
    %v633 = vld [vmem:[%s9] sm:$0xf]
    %v634 = vpack.c.bf16 %v628, %v628
    %v635 = vpack.c.bf16 %v629, %v629
    %vm636 = vcmask 64512
    %v638 = vsel %vm636, %v633, 0
    %v641 = vsel %vm240, %v634, 0
    %v644 = vsel %vm240, %v635, 0
    %646 = vmatprep.subr.bf16.mxu0 %v644
    %647 = vmatpush1.bf16.msra.mxu0 %v641
    %648 = vmatprep.subr.bf16.mxu0 0
    %649 = vmatpush1.bf16.msra.mxu0 0
    %650 = vmatprep.subr.bf16.mxu0 0
    %651 = vmatpush1.bf16.msra.mxu0 0
    %652 = vmatprep.subr.bf16.mxu0 0
    %653 = vmatpush1.bf16.msra.mxu0 0
    %654 = vmatprep.subr.bf16.mxu0 0
    %655 = vmatpush1.bf16.msra.mxu0 0
    %656 = vmatprep.subr.bf16.mxu0 0
    %657 = vmatpush1.bf16.msra.mxu0 0
    %658 = vmatprep.subr.bf16.mxu0 0
    %659 = vmatpush1.bf16.msra.mxu0 0
    %660 = vmatprep.subr.bf16.mxu0 0
    %661 = vmatpush1.bf16.msra.mxu0 0
    %662 = vmatprep.subr.bf16.mxu0 0
    %663 = vmatpush1.bf16.msra.mxu0 0
    %664 = vmatprep.subr.bf16.mxu0 0
    %665 = vmatpush1.bf16.msra.mxu0 0
    %666 = vmatprep.subr.bf16.mxu0 0
    %667 = vmatpush1.bf16.msra.mxu0 0
    %668 = vmatprep.subr.bf16.mxu0 0
    %669 = vmatpush1.bf16.msra.mxu0 0
    %670 = vmatprep.subr.bf16.mxu0 0
    %671 = vmatpush1.bf16.msra.mxu0 0
    %672 = vmatprep.subr.bf16.mxu0 0
    %673 = vmatpush1.bf16.msra.mxu0 0
    %674 = vmatprep.subr.bf16.mxu0 0
    %675 = vmatpush1.bf16.msra.mxu0 0
    %676 = vmatprep.subr.bf16.mxu0 0
    %677 = vmatpush1.bf16.msra.mxu0 0
    %678 = vmatprep.mubr.bf16.mxu0 0
    %679 = vmatmul.mubr.bf16.gmra.mrb[0].mxu0 %v638
    %v680 = vpop.f32.mrb[0].mxu0
    %v681 = vadd.f32 0.0, %v680
    %v682 = vpop.f32.mrb[0].mxu0
    %v683 = vadd.f32 0.0, %v682
    %v684 = vpop.f32.mrb[0].mxu0
    %v685 = vpop.f32.mrb[0].mxu0
    %686 = vdwg.mxu0
    %v688 = vsel %vm636, %v630, 0
    %v691 = vsel %vm240, %v631, 0
    %v694 = vsel %vm240, %v632, 0
    %696 = vmatprep.subr.bf16.mxu0 %v694
    %697 = vmatpush1.bf16.msra.mxu0 %v691
    %698 = vmatprep.subr.bf16.mxu0 0
    %699 = vmatpush1.bf16.msra.mxu0 0
    %700 = vmatprep.subr.bf16.mxu0 0
    %701 = vmatpush1.bf16.msra.mxu0 0
    %702 = vmatprep.subr.bf16.mxu0 0
    %703 = vmatpush1.bf16.msra.mxu0 0
    %704 = vmatprep.subr.bf16.mxu0 0
    %705 = vmatpush1.bf16.msra.mxu0 0
    %706 = vmatprep.subr.bf16.mxu0 0
    %707 = vmatpush1.bf16.msra.mxu0 0
    %708 = vmatprep.subr.bf16.mxu0 0
    %709 = vmatpush1.bf16.msra.mxu0 0
    %710 = vmatprep.subr.bf16.mxu0 0
    %711 = vmatpush1.bf16.msra.mxu0 0
    %712 = vmatprep.subr.bf16.mxu0 0
    %713 = vmatpush1.bf16.msra.mxu0 0
    %714 = vmatprep.subr.bf16.mxu0 0
    %715 = vmatpush1.bf16.msra.mxu0 0
    %716 = vmatprep.subr.bf16.mxu0 0
    %717 = vmatpush1.bf16.msra.mxu0 0
    %718 = vmatprep.subr.bf16.mxu0 0
    %719 = vmatpush1.bf16.msra.mxu0 0
    %720 = vmatprep.subr.bf16.mxu0 0
    %721 = vmatpush1.bf16.msra.mxu0 0
    %722 = vmatprep.subr.bf16.mxu0 0
    %723 = vmatpush1.bf16.msra.mxu0 0
    %724 = vmatprep.subr.bf16.mxu0 0
    %725 = vmatpush1.bf16.msra.mxu0 0
    %726 = vmatprep.subr.bf16.mxu0 0
    %727 = vmatpush1.bf16.msra.mxu0 0
    %728 = vmatprep.mubr.bf16.mxu0 0
    %729 = vmatmul.mubr.bf16.gmra.mrb[0].mxu0 %v688
    %v730 = vpop.f32.mrb[0].mxu0
    %v731 = vadd.f32 %v681, %v730
    %v732 = vpop.f32.mrb[0].mxu0
    %v733 = vadd.f32 %v683, %v732
    %v734 = vpop.f32.mrb[0].mxu0
    %v735 = vpop.f32.mrb[0].mxu0
    %736 = vdwg.mxu0
    %v737 = vld [vmem:[%s10] sm:$0xff]
    %739 = vset.pattern.permute.xlu0 0
    %740 = vperm.xlu0 %739, %v737
    %v741 = vpop.permute.xlu0 %740
    %v743 = vadd.f32 %v731, %v741
    %v744 = vadd.f32 %v733, %v741
    %v745 = vadd.f32 %v743, %v40
    %v746 = vadd.f32 %v744, %v41
    %v747 = vmax.f32 %v745, 0.0
    %v748 = vmax.f32 %v746, 0.0
    %749 = vst [vmem:[#allocation2] sm:$0xff] %v747
    %750 = vst [vmem:[#allocation2 + $0x8] sm:$0xff] %v748
    // Predicated region
    $region46: #{tpu_custom_call.1} parent=1 // pred_check
      _
    $region47: #{tpu_custom_call.1} parent=1 // pred_check_branch
      %752 = sbr.rel (0) target = $region49
    $region48: #{tpu_custom_call.1} parent=1 // pred_region
      %s754 = ssub.s32 256, 256
      %755 = vsyncadd [#allocation3], %s754
      %s757 = sshll.u32 [#allocation2], 4
      %s758 = int_to_ptr.vmem [resolvable:$true] %s757
      %760 = dma.vmem_to_hbm [thread:$0]  %s758, 256, %s11, [#allocation3]
    $region49: #{tpu_custom_call.1} parent=1 // pred_fallthru
      _
    // Predicated region
    $region50: #{tpu_custom_call.1} parent=1 // pred_check
      _
    $region51: #{tpu_custom_call.1} parent=1 // pred_check_branch
      %762 = sbr.rel (0) target = $region53
    $region52: #{tpu_custom_call.1} parent=1 // pred_region
      %763 = dma.done [#allocation3], 256
    $region53: #{tpu_custom_call.1} parent=1 // pred_fallthru
      _
    %764 = vsyncpa [#allocation3], 1

</llo_original>
